<compile_context>
chip_gen: v7x
topology: tpu7x:2x2x1
jax: 0.10.0
libtpu: 0.0.40
codegen_flags: <defaults>
</compile_context>

<pallas_src>
import jax
import jax.numpy as jnp
from jax import lax
from jax.experimental import pallas as pl
from jax.experimental.pallas import tpu as pltpu


def _round_up(n, m):
    return ((n + m - 1) // m) * m


def mlp_kernel(x_ref, w1_ref, b1_ref, w2t_ref, b2_ref, o_ref):
    # fc1 + ReLU, all f32 (K=32 -> MXU time is negligible; keeps PyTorch parity).
    h = jnp.dot(x_ref[...], w1_ref[...], preferred_element_type=jnp.float32)
    h = jnp.maximum(h + b1_ref[...], 0.0)                    # (tile, hidden) f32

    # fc2: contract the hidden axis of both operands (a @ b.T dim numbers) so
    # the result is lane-dense (1, tile) instead of the degenerate (tile, 1).
    z = lax.dot_general(
        w2t_ref[...], h,
        dimension_numbers=(((1,), (1,)), ((), ())),
        preferred_element_type=jnp.float32)                  # (1, tile)
    z = z + b2_ref[0, 0]                                     # scalar bias from SMEM

    o_ref[...] = jax.nn.sigmoid(z).astype(o_ref.dtype)


def mlp_forward(x, w1, b1, w2t, b2, *, batch_tile=4096):
    """x:(B,in) f32, w1:(in,hidden), b1:(1,hidden), w2t:(1,hidden), b2:(1,1) -> (B,1) f32."""
    B, in_features = x.shape
    hidden = w1.shape[1]

    # Tile sizing:
    #  * B <= batch_tile: one full-batch block (no padding, no forced split;
    #    block shape == full array dims satisfies the (8,128) rule).
    #  * B  > batch_tile: fixed large tile (multiple of 128 -> lane-dense,
    #    unmasked output stores); last block overhangs, OOB stores dropped.
    batch_tile = _round_up(batch_tile, 128)
    if B <= batch_tile:
        tile = B
    else:
        tile = batch_tile
    grid = (pl.cdiv(B, tile),)

    out = pl.pallas_call(
        mlp_kernel,
        out_shape=jax.ShapeDtypeStruct((1, B), jnp.float32),
        grid_spec=pltpu.PrefetchScalarGridSpec(
            num_scalar_prefetch=0,
            grid=grid,
            in_specs=[
                pl.BlockSpec((tile, in_features), lambda i: (i, 0)),     # x
                pl.BlockSpec((in_features, hidden), lambda i: (0, 0)),   # w1 (grid-invariant)
                pl.BlockSpec((1, hidden), lambda i: (0, 0)),             # b1
                pl.BlockSpec((1, hidden), lambda i: (0, 0)),             # w2 (PyTorch layout)
                pl.BlockSpec(memory_space=pltpu.MemorySpace.SMEM),       # b2 scalar
            ],
            out_specs=pl.BlockSpec((1, tile), lambda i: (0, i)),         # lane-dense output
        ),
        compiler_params=pltpu.CompilerParams(
            dimension_semantics=("parallel",),
        ),
    )(x, w1, b1, w2t, b2)

    # Free layout plumbing: (1, B) -> (B, 1).
    return out.reshape(B, 1)


def xavier_uniform(key, fan_in, fan_out):
    bound = (6.0 / (fan_in + fan_out)) ** 0.5
    return jax.random.uniform(key, (fan_in, fan_out), jnp.float32, -bound, bound)


def linear_bias_init(key, fan_in, shape):
    # PyTorch nn.Linear default bias init: U(-1/sqrt(fan_in), 1/sqrt(fan_in))
    bound = 1.0 / (fan_in ** 0.5)
    return jax.random.uniform(key, shape, jnp.float32, -bound, bound)


if __name__ == "__main__":
    in_features = 32
    hidden_features = 64
    batch = 200  # not a multiple of 128: exercises the full-batch single-block path

    key = jax.random.PRNGKey(0)
    k_x, k_w1, k_b1, k_w2, k_b2 = jax.random.split(key, 5)

    x = jax.random.normal(k_x, (batch, in_features), jnp.float32)
    w1 = xavier_uniform(k_w1, in_features, hidden_features)          # (in, hidden)
    b1 = linear_bias_init(k_b1, in_features, (1, hidden_features))
    w2t = xavier_uniform(k_w2, hidden_features, 1).T                 # (1, hidden) PyTorch layout
    b2 = linear_bias_init(k_b2, hidden_features, (1, 1))

    y = jax.block_until_ready(mlp_forward(x, w1, b1, w2t, b2))

    # Pure-JAX f32 reference (same precision class as the in-kernel f32 dots).
    h_ref = jnp.maximum(x @ w1 + b1, 0.0)
    ref = jax.nn.sigmoid(h_ref @ w2t.T + b2)

    assert y.shape == (batch, 1)
    assert jnp.allclose(y, ref, atol=5e-3, rtol=5e-3), float(jnp.max(jnp.abs(y - ref)))

    print("KERNEL_OK")
</pallas_src>

<mosaic_0001>
module attributes {stable_mosaic.version = 11 : i64} {
  func.func @mlp_kernel(%arg0: i32, %arg1: memref<200x32xf32, #tpu.memory_space<vmem>>, %arg2: memref<32x64xf32, #tpu.memory_space<vmem>>, %arg3: memref<1x64xf32, #tpu.memory_space<vmem>>, %arg4: memref<1x64xf32, #tpu.memory_space<vmem>>, %arg5: memref<1x1xf32, #tpu.memory_space<smem>>, %arg6: memref<1x200xf32, #tpu.memory_space<vmem>>) attributes {dimension_semantics = [#tpu.dimension_semantics<parallel>], iteration_bounds = array<i64: 1>, scalar_prefetch = 0 : i64, scratch_operands = 0 : i64, tpu.core_type = #tpu.core_type<tc>, window_params = [{transform_indices = @transform_0, window_bounds = array<i64: 200, 32>}, {pipeline_mode = #tpu.pipeline_mode<synchronous>, transform_indices = @transform_1, window_bounds = array<i64: 32, 64>}, {pipeline_mode = #tpu.pipeline_mode<synchronous>, transform_indices = @transform_2, window_bounds = array<i64: 1, 64>}, {pipeline_mode = #tpu.pipeline_mode<synchronous>, transform_indices = @transform_3, window_bounds = array<i64: 1, 64>}, {transform_indices = @transform_4, window_bounds = array<i64: 1, 1>}, {transform_indices = @transform_5, window_bounds = array<i64: 1, 200>}]} {
    %c0 = arith.constant 0 : index
    %c0_0 = arith.constant 0 : index
    %0 = vector.load %arg1[%c0, %c0_0] : memref<200x32xf32, #tpu.memory_space<vmem>>, vector<200x32xf32>
    %c0_1 = arith.constant 0 : index
    %c0_2 = arith.constant 0 : index
    %1 = vector.load %arg2[%c0_1, %c0_2] : memref<32x64xf32, #tpu.memory_space<vmem>>, vector<32x64xf32>
    %cst = arith.constant dense<0.000000e+00> : vector<200x64xf32>
    %2 = tpu.matmul %0, %1, %cst {dimension_numbers = #tpu.dot_dimension_numbers<[1], [0], [0], [1], [0, 0, 1, 1], [], []>} : vector<200x32xf32>, vector<32x64xf32>, vector<200x64xf32> -> vector<200x64xf32>
    %c0_3 = arith.constant 0 : index
    %c0_4 = arith.constant 0 : index
    %3 = vector.load %arg3[%c0_3, %c0_4] : memref<1x64xf32, #tpu.memory_space<vmem>>, vector<1x64xf32>
    %4 = vector.broadcast %3 : vector<1x64xf32> to vector<200x64xf32>
    %5 = arith.addf %2, %4 : vector<200x64xf32>
    %cst_5 = arith.constant 0.000000e+00 : f32
    %6 = vector.broadcast %cst_5 : f32 to vector<200x64xf32>
    %7 = arith.maximumf %5, %6 : vector<200x64xf32>
    %c0_6 = arith.constant 0 : index
    %c0_7 = arith.constant 0 : index
    %8 = vector.load %arg4[%c0_6, %c0_7] : memref<1x64xf32, #tpu.memory_space<vmem>>, vector<1x64xf32>
    %cst_8 = arith.constant dense<0.000000e+00> : vector<1x200xf32>
    %9 = tpu.matmul %8, %7, %cst_8 {dimension_numbers = #tpu.dot_dimension_numbers<[1], [1], [0], [0], [0, 0, 1, 0], [], []>} : vector<1x64xf32>, vector<200x64xf32>, vector<1x200xf32> -> vector<1x200xf32>
    %c0_9 = arith.constant 0 : index
    %c0_10 = arith.constant 0 : index
    %10 = memref.load %arg5[%c0_9, %c0_10] : memref<1x1xf32, #tpu.memory_space<smem>>
    %11 = vector.broadcast %10 : f32 to vector<1x200xf32>
    %12 = arith.addf %9, %11 : vector<1x200xf32>
    %13 = arith.negf %12 : vector<1x200xf32>
    %14 = math.exp %13 : vector<1x200xf32>
    %cst_11 = arith.constant 1.000000e+00 : f32
    %15 = vector.broadcast %cst_11 : f32 to vector<1x200xf32>
    %16 = arith.addf %15, %14 : vector<1x200xf32>
    %17 = arith.divf %15, %16 : vector<1x200xf32>
    %c0_12 = arith.constant 0 : index
    %c0_13 = arith.constant 0 : index
    %18 = vector.load %arg6[%c0_12, %c0_13] : memref<1x200xf32, #tpu.memory_space<vmem>>, vector<1x200xf32>
    tpu.vector_store %arg6[%c0_12, %c0_13], %17 {strides = array<i32>} : memref<1x200xf32, #tpu.memory_space<vmem>>, vector<1x200xf32>,
    return
  }
  func.func @transform_0(%arg0: i32) -> (i32, i32) {
    %c0_i32 = arith.constant 0 : i32
    %c0_i32_0 = arith.constant 0 : i32
    return %arg0, %c0_i32 : i32, i32
  }
  func.func @transform_1(%arg0: i32) -> (i32, i32) {
    %c0_i32 = arith.constant 0 : i32
    %c0_i32_0 = arith.constant 0 : i32
    %c0_i32_1 = arith.constant 0 : i32
    return %c0_i32, %c0_i32_0 : i32, i32
  }
  func.func @transform_2(%arg0: i32) -> (i32, i32) {
    %c0_i32 = arith.constant 0 : i32
    %c0_i32_0 = arith.constant 0 : i32
    %c0_i32_1 = arith.constant 0 : i32
    return %c0_i32, %c0_i32_0 : i32, i32
  }
  func.func @transform_3(%arg0: i32) -> (i32, i32) {
    %c0_i32 = arith.constant 0 : i32
    %c0_i32_0 = arith.constant 0 : i32
    %c0_i32_1 = arith.constant 0 : i32
    return %c0_i32, %c0_i32_0 : i32, i32
  }
  func.func @transform_4(%arg0: i32) -> (i32, i32) {
    %c0_i32 = arith.constant 0 : i32
    %c0_i32_0 = arith.constant 0 : i32
    %c0_i32_1 = arith.constant 0 : i32
    return %c0_i32, %c0_i32_0 : i32, i32
  }
  func.func @transform_5(%arg0: i32) -> (i32, i32) {
    %c0_i32 = arith.constant 0 : i32
    %c0_i32_0 = arith.constant 0 : i32
    return %c0_i32, %arg0 : i32, i32
  }
}

</mosaic_0001>

<llo_original>
// kernel: tpu_custom_call.1
$region0: #{tpu_custom_call.1}
  #allocation0 [shape = 'u32[]', space=smem, size = 0x4, offset = 0x4, fixed_abs, tag = 'smem constant byte address 0x4 - core index']
  #allocation1 [shape = 'u32[144,128]{1,0:T(1,128)}', space=vmem, size = 0x12000, scoped, tag = 'internal scratch']
  #allocation2 [shape = 'f32[1,1]{1,0:T(1,128)S(6)}', space=smem, size = 0x200, scoped, tag = 'scoped memory for tpu_custom_call.1']
  %s0 = inlined_call_operand.vmem [shape: f32[200,32], index: 0, kind: input, shape index: {}]
  %s1 = inlined_call_operand.vmem [shape: f32[32,64], index: 1, kind: input, shape index: {}]
  %s2 = inlined_call_operand.vmem [shape: f32[1,64], index: 2, kind: input, shape index: {}]
  %s3 = inlined_call_operand.vmem [shape: f32[1,64], index: 3, kind: input, shape index: {}]
  %s4 = inlined_call_operand.<no memory space> [shape: f32[1,1], index: 4, kind: input, shape index: {}]
  %s5 = inlined_call_operand.hbm [shape: f32[1,200], index: 5, kind: output, shape index: {}]
  %s6 = sld [smem:[#allocation0]]
  $region30: #{tpu_custom_call.1} parent=0
    _
  %s8 = ssub.s32 1, %s6
  %s9 = scalar_select 0, %s8, %s6
  %10 = sst [smem:[#allocation2]] %s4
  $region1: #{tpu_custom_call.1} parent=0
    #allocation3 [shape = 'u8[1024]{0}', space=vmem, size = 0x400, scoped, tag = 'output window, operand 0, single buffered']
    #allocation4 [shape = 's32[1]{0}', space=sflag, size = 0x4, scoped, tag = 'scoped memory for tpu_custom_call.1']
    %11 = vsyncpa [#allocation4], 0
    // Predicated region
    $region2: #{tpu_custom_call.1} parent=1 // pred_check
      _
    $region3: #{tpu_custom_call.1} parent=1 // pred_check_branch
      %13 = sbr.rel (0) target = $region5
    $region4: #{tpu_custom_call.1} parent=1 // pred_region
      _
    $region5: #{tpu_custom_call.1} parent=1 // pred_fallthru
      _
    // Predicated region
    $region6: #{tpu_custom_call.1} parent=1 // pred_check
      _
    $region7: #{tpu_custom_call.1} parent=1 // pred_check_branch
      %15 = sbr.rel (0) target = $region9
    $region8: #{tpu_custom_call.1} parent=1 // pred_region
      _
    $region9: #{tpu_custom_call.1} parent=1 // pred_fallthru
      _
    // Predicated region
    $region10: #{tpu_custom_call.1} parent=1 // pred_check
      _
    $region11: #{tpu_custom_call.1} parent=1 // pred_check_branch
      %17 = sbr.rel (0) target = $region13
    $region12: #{tpu_custom_call.1} parent=1 // pred_region
      _
    $region13: #{tpu_custom_call.1} parent=1 // pred_fallthru
      _
    // Predicated region
    $region14: #{tpu_custom_call.1} parent=1 // pred_check
      _
    $region15: #{tpu_custom_call.1} parent=1 // pred_check_branch
      %19 = sbr.rel (0) target = $region17
    $region16: #{tpu_custom_call.1} parent=1 // pred_region
      _
    $region17: #{tpu_custom_call.1} parent=1 // pred_fallthru
      _
    // Predicated region
    $region18: #{tpu_custom_call.1} parent=1 // pred_check
      _
    $region19: #{tpu_custom_call.1} parent=1 // pred_check_branch
      %21 = sbr.rel (0) target = $region21
    $region20: #{tpu_custom_call.1} parent=1 // pred_region
      _
    $region21: #{tpu_custom_call.1} parent=1 // pred_fallthru
      _
    %v22 = vld [vmem:[%s0] sm:$0xff]
    %v23 = vld [vmem:[%s0 + $0x8] sm:$0xff]
    %v24 = vld [vmem:[%s0 + $0x10] sm:$0xff]
    %v25 = vld [vmem:[%s0 + $0x18] sm:$0xff]
    %v26 = vld [vmem:[%s0 + $0x20] sm:$0xff]
    %v27 = vld [vmem:[%s0 + $0x28] sm:$0xff]
    %v28 = vld [vmem:[%s0 + $0x30] sm:$0xff]
    %v29 = vld [vmem:[%s0 + $0x38] sm:$0xff]
    %v30 = vld [vmem:[%s0 + $0x40] sm:$0xff]
    %v31 = vld [vmem:[%s0 + $0x48] sm:$0xff]
    %v32 = vld [vmem:[%s0 + $0x50] sm:$0xff]
    %v33 = vld [vmem:[%s0 + $0x58] sm:$0xff]
    %v34 = vld [vmem:[%s0 + $0x60] sm:$0xff]
    %v35 = vld [vmem:[%s0 + $0x68] sm:$0xff]
    %v36 = vld [vmem:[%s0 + $0x70] sm:$0xff]
    %v37 = vld [vmem:[%s0 + $0x78] sm:$0xff]
    %v38 = vld [vmem:[%s0 + $0x80] sm:$0xff]
    %v39 = vld [vmem:[%s0 + $0x88] sm:$0xff]
    %v40 = vld [vmem:[%s0 + $0x90] sm:$0xff]
    %v41 = vld [vmem:[%s0 + $0x98] sm:$0xff]
    %v42 = vld [vmem:[%s0 + $0xa0] sm:$0xff]
    %v43 = vld [vmem:[%s0 + $0xa8] sm:$0xff]
    %v44 = vld [vmem:[%s0 + $0xb0] sm:$0xff]
    %v45 = vld [vmem:[%s0 + $0xb8] sm:$0xff]
    %v46 = vld [vmem:[%s0 + $0xc0] sm:$0xff]
    %v47 = vld [vmem:[%s1] sm:$0xff]
    %v48 = vld [vmem:[%s1 + $0x8] sm:$0xff]
    %v49 = vld [vmem:[%s1 + $0x10] sm:$0xff]
    %v50 = vld [vmem:[%s1 + $0x18] sm:$0xff]
    %v51 = vld [vmem:[%s2] sm:$0x1]
    %v53 = vlaneseq
    %v54 = vshrl.u32 %v53, 7
    %v55 = vsub.s32 0, %v54
    %v56 = vrot.slane %v51, %v55
    %vm58 = vcmask 261120
    %v60 = vsel %vm58, %v22, 0
    %v63 = vsel %vm58, %v23, 0
    %v66 = vsel %vm58, %v24, 0
    %v69 = vsel %vm58, %v25, 0
    %v72 = vsel %vm58, %v26, 0
    %v75 = vsel %vm58, %v27, 0
    %v78 = vsel %vm58, %v28, 0
    %v81 = vsel %vm58, %v29, 0
    %v84 = vsel %vm58, %v30, 0
    %v87 = vsel %vm58, %v31, 0
    %v90 = vsel %vm58, %v32, 0
    %v93 = vsel %vm58, %v33, 0
    %v96 = vsel %vm58, %v34, 0
    %v99 = vsel %vm58, %v35, 0
    %v102 = vsel %vm58, %v36, 0
    %v105 = vsel %vm58, %v37, 0
    %v108 = vsel %vm58, %v38, 0
    %v111 = vsel %vm58, %v39, 0
    %v114 = vsel %vm58, %v40, 0
    %v117 = vsel %vm58, %v41, 0
    %v120 = vsel %vm58, %v42, 0
    %v123 = vsel %vm58, %v43, 0
    %v126 = vsel %vm58, %v44, 0
    %v129 = vsel %vm58, %v45, 0
    %v132 = vsel %vm58, %v46, 0
    %134 = vmatprep.subr.mxu0 0.0
    %135 = vmatpush1.msra.mxu0 %v47
    %136 = vmatprep.subr.mxu0 0.0
    %137 = vmatpush1.msra.mxu0 %v48
    %138 = vmatprep.subr.mxu0 0.0
    %139 = vmatpush1.msra.mxu0 %v49
    %140 = vmatprep.subr.mxu0 0.0
    %141 = vmatpush1.msra.mxu0 %v50
    %142 = vmatprep.subr.mxu0 0.0
    %143 = vmatpush1.msra.mxu0 0.0
    %144 = vmatprep.subr.mxu0 0.0
    %145 = vmatpush1.msra.mxu0 0.0
    %146 = vmatprep.subr.mxu0 0.0
    %147 = vmatpush1.msra.mxu0 0.0
    %148 = vmatprep.subr.mxu0 0.0
    %149 = vmatpush1.msra.mxu0 0.0
    %150 = vmatprep.subr.mxu0 0.0
    %151 = vmatpush1.msra.mxu0 0.0
    %152 = vmatprep.subr.mxu0 0.0
    %153 = vmatpush1.msra.mxu0 0.0
    %154 = vmatprep.subr.mxu0 0.0
    %155 = vmatpush1.msra.mxu0 0.0
    %156 = vmatprep.subr.mxu0 0.0
    %157 = vmatpush1.msra.mxu0 0.0
    %158 = vmatprep.subr.mxu0 0.0
    %159 = vmatpush1.msra.mxu0 0.0
    %160 = vmatprep.subr.mxu0 0.0
    %161 = vmatpush1.msra.mxu0 0.0
    %162 = vmatprep.subr.mxu0 0.0
    %163 = vmatpush1.msra.mxu0 0.0
    %164 = vmatprep.subr.mxu0 0.0
    %165 = vmatpush1.msra.mxu0 0.0
    %166 = vmatprep.subr.mxu0 0.0
    %167 = vmatpush1.msra.mxu0 0.0
    %168 = vmatprep.subr.mxu0 0.0
    %169 = vmatpush1.msra.mxu0 0.0
    %170 = vmatprep.subr.mxu0 0.0
    %171 = vmatpush1.msra.mxu0 0.0
    %172 = vmatprep.subr.mxu0 0.0
    %173 = vmatpush1.msra.mxu0 0.0
    %174 = vmatprep.subr.mxu0 0.0
    %175 = vmatpush1.msra.mxu0 0.0
    %176 = vmatprep.subr.mxu0 0.0
    %177 = vmatpush1.msra.mxu0 0.0
    %178 = vmatprep.subr.mxu0 0.0
    %179 = vmatpush1.msra.mxu0 0.0
    %180 = vmatprep.subr.mxu0 0.0
    %181 = vmatpush1.msra.mxu0 0.0
    %182 = vmatprep.subr.mxu0 0.0
    %183 = vmatpush1.msra.mxu0 0.0
    %184 = vmatprep.subr.mxu0 0.0
    %185 = vmatpush1.msra.mxu0 0.0
    %186 = vmatprep.subr.mxu0 0.0
    %187 = vmatpush1.msra.mxu0 0.0
    %188 = vmatprep.subr.mxu0 0.0
    %189 = vmatpush1.msra.mxu0 0.0
    %190 = vmatprep.subr.mxu0 0.0
    %191 = vmatpush1.msra.mxu0 0.0
    %192 = vmatprep.subr.mxu0 0.0
    %193 = vmatpush1.msra.mxu0 0.0
    %194 = vmatprep.subr.mxu0 0.0
    %195 = vmatpush1.msra.mxu0 0.0
    %196 = vmatprep.subr.mxu0 0.0
    %197 = vmatpush1.msra.mxu0 0.0
    %198 = vmatprep.mubr.f32.mxu0 0.0
    %199 = vmatmul.mubr.f32.gmra.mrb[0].mxu0 %v60
    %v200 = vpop.f32.mrb[0].mxu0
    %v201 = vadd.f32 %v56, %v200
    %v202 = vpop.f32.mrb[0].mxu0
    %203 = vmatprep.mubr.f32.mxu0 0.0
    %204 = vmatmul.mubr.f32.gmra.mrb[0].mxu0 %v63
    %v205 = vpop.f32.mrb[0].mxu0
    %v206 = vadd.f32 %v56, %v205
    %v207 = vpop.f32.mrb[0].mxu0
    %208 = vmatprep.mubr.f32.mxu0 0.0
    %209 = vmatmul.mubr.f32.gmra.mrb[0].mxu0 %v66
    %v210 = vpop.f32.mrb[0].mxu0
    %v211 = vadd.f32 %v56, %v210
    %v212 = vpop.f32.mrb[0].mxu0
    %213 = vmatprep.mubr.f32.mxu0 0.0
    %214 = vmatmul.mubr.f32.gmra.mrb[0].mxu0 %v69
    %v215 = vpop.f32.mrb[0].mxu0
    %v216 = vadd.f32 %v56, %v215
    %v217 = vpop.f32.mrb[0].mxu0
    %218 = vmatprep.mubr.f32.mxu0 0.0
    %219 = vmatmul.mubr.f32.gmra.mrb[0].mxu0 %v72
    %v220 = vpop.f32.mrb[0].mxu0
    %v221 = vadd.f32 %v56, %v220
    %v222 = vpop.f32.mrb[0].mxu0
    %223 = vmatprep.mubr.f32.mxu0 0.0
    %224 = vmatmul.mubr.f32.gmra.mrb[0].mxu0 %v75
    %v225 = vpop.f32.mrb[0].mxu0
    %v226 = vadd.f32 %v56, %v225
    %v227 = vpop.f32.mrb[0].mxu0
    %228 = vmatprep.mubr.f32.mxu0 0.0
    %229 = vmatmul.mubr.f32.gmra.mrb[0].mxu0 %v78
    %v230 = vpop.f32.mrb[0].mxu0
    %v231 = vadd.f32 %v56, %v230
    %v232 = vpop.f32.mrb[0].mxu0
    %233 = vmatprep.mubr.f32.mxu0 0.0
    %234 = vmatmul.mubr.f32.gmra.mrb[0].mxu0 %v81
    %v235 = vpop.f32.mrb[0].mxu0
    %v236 = vadd.f32 %v56, %v235
    %v237 = vpop.f32.mrb[0].mxu0
    %238 = vmatprep.mubr.f32.mxu0 0.0
    %239 = vmatmul.mubr.f32.gmra.mrb[0].mxu0 %v84
    %v240 = vpop.f32.mrb[0].mxu0
    %v241 = vadd.f32 %v56, %v240
    %v242 = vpop.f32.mrb[0].mxu0
    %243 = vmatprep.mubr.f32.mxu0 0.0
    %244 = vmatmul.mubr.f32.gmra.mrb[0].mxu0 %v87
    %v245 = vpop.f32.mrb[0].mxu0
    %v246 = vadd.f32 %v56, %v245
    %v247 = vpop.f32.mrb[0].mxu0
    %248 = vmatprep.mubr.f32.mxu0 0.0
    %249 = vmatmul.mubr.f32.gmra.mrb[0].mxu0 %v90
    %v250 = vpop.f32.mrb[0].mxu0
    %v251 = vadd.f32 %v56, %v250
    %v252 = vpop.f32.mrb[0].mxu0
    %253 = vmatprep.mubr.f32.mxu0 0.0
    %254 = vmatmul.mubr.f32.gmra.mrb[0].mxu0 %v93
    %v255 = vpop.f32.mrb[0].mxu0
    %v256 = vadd.f32 %v56, %v255
    %v257 = vpop.f32.mrb[0].mxu0
    %258 = vmatprep.mubr.f32.mxu0 0.0
    %259 = vmatmul.mubr.f32.gmra.mrb[0].mxu0 %v96
    %v260 = vpop.f32.mrb[0].mxu0
    %v261 = vadd.f32 %v56, %v260
    %v262 = vpop.f32.mrb[0].mxu0
    %263 = vmatprep.mubr.f32.mxu0 0.0
    %264 = vmatmul.mubr.f32.gmra.mrb[0].mxu0 %v99
    %v265 = vpop.f32.mrb[0].mxu0
    %v266 = vadd.f32 %v56, %v265
    %v267 = vpop.f32.mrb[0].mxu0
    %268 = vmatprep.mubr.f32.mxu0 0.0
    %269 = vmatmul.mubr.f32.gmra.mrb[0].mxu0 %v102
    %v270 = vpop.f32.mrb[0].mxu0
    %v271 = vadd.f32 %v56, %v270
    %v272 = vpop.f32.mrb[0].mxu0
    %273 = vmatprep.mubr.f32.mxu0 0.0
    %274 = vmatmul.mubr.f32.gmra.mrb[0].mxu0 %v105
    %v275 = vpop.f32.mrb[0].mxu0
    %v276 = vadd.f32 %v56, %v275
    %v277 = vpop.f32.mrb[0].mxu0
    %278 = vmatprep.mubr.f32.mxu0 0.0
    %279 = vmatmul.mubr.f32.gmra.mrb[0].mxu0 %v108
    %v280 = vpop.f32.mrb[0].mxu0
    %v281 = vadd.f32 %v56, %v280
    %v282 = vpop.f32.mrb[0].mxu0
    %283 = vmatprep.mubr.f32.mxu0 0.0
    %284 = vmatmul.mubr.f32.gmra.mrb[0].mxu0 %v111
    %v285 = vpop.f32.mrb[0].mxu0
    %v286 = vadd.f32 %v56, %v285
    %v287 = vpop.f32.mrb[0].mxu0
    %288 = vmatprep.mubr.f32.mxu0 0.0
    %289 = vmatmul.mubr.f32.gmra.mrb[0].mxu0 %v114
    %v290 = vpop.f32.mrb[0].mxu0
    %v291 = vadd.f32 %v56, %v290
    %v292 = vpop.f32.mrb[0].mxu0
    %293 = vmatprep.mubr.f32.mxu0 0.0
    %294 = vmatmul.mubr.f32.gmra.mrb[0].mxu0 %v117
    %v295 = vpop.f32.mrb[0].mxu0
    %v296 = vadd.f32 %v56, %v295
    %v297 = vpop.f32.mrb[0].mxu0
    %298 = vmatprep.mubr.f32.mxu0 0.0
    %299 = vmatmul.mubr.f32.gmra.mrb[0].mxu0 %v120
    %v300 = vpop.f32.mrb[0].mxu0
    %v301 = vadd.f32 %v56, %v300
    %v302 = vpop.f32.mrb[0].mxu0
    %303 = vmatprep.mubr.f32.mxu0 0.0
    %304 = vmatmul.mubr.f32.gmra.mrb[0].mxu0 %v123
    %v305 = vpop.f32.mrb[0].mxu0
    %v306 = vadd.f32 %v56, %v305
    %v307 = vpop.f32.mrb[0].mxu0
    %308 = vmatprep.mubr.f32.mxu0 0.0
    %309 = vmatmul.mubr.f32.gmra.mrb[0].mxu0 %v126
    %v310 = vpop.f32.mrb[0].mxu0
    %v311 = vadd.f32 %v56, %v310
    %v312 = vpop.f32.mrb[0].mxu0
    %313 = vmatprep.mubr.f32.mxu0 0.0
    %314 = vmatmul.mubr.f32.gmra.mrb[0].mxu0 %v129
    %v315 = vpop.f32.mrb[0].mxu0
    %v316 = vadd.f32 %v56, %v315
    %v317 = vpop.f32.mrb[0].mxu0
    %318 = vmatprep.mubr.f32.mxu0 0.0
    %319 = vmatmul.mubr.f32.gmra.mrb[0].mxu0 %v132
    %v320 = vpop.f32.mrb[0].mxu0
    %v321 = vadd.f32 %v56, %v320
    %v322 = vpop.f32.mrb[0].mxu0
    %323 = vdwg.mxu0
    %v324 = vmax.f32 %v201, 0.0
    %v325 = vmax.f32 %v206, 0.0
    %v326 = vmax.f32 %v211, 0.0
    %v327 = vmax.f32 %v216, 0.0
    %v328 = vmax.f32 %v221, 0.0
    %v329 = vmax.f32 %v226, 0.0
    %v330 = vmax.f32 %v231, 0.0
    %v331 = vmax.f32 %v236, 0.0
    %v332 = vmax.f32 %v241, 0.0
    %v333 = vmax.f32 %v246, 0.0
    %v334 = vmax.f32 %v251, 0.0
    %v335 = vmax.f32 %v256, 0.0
    %v336 = vmax.f32 %v261, 0.0
    %v337 = vmax.f32 %v266, 0.0
    %v338 = vmax.f32 %v271, 0.0
    %v339 = vmax.f32 %v276, 0.0
    %v340 = vmax.f32 %v281, 0.0
    %v341 = vmax.f32 %v286, 0.0
    %v342 = vmax.f32 %v291, 0.0
    %v343 = vmax.f32 %v296, 0.0
    %v344 = vmax.f32 %v301, 0.0
    %v345 = vmax.f32 %v306, 0.0
    %v346 = vmax.f32 %v311, 0.0
    %v347 = vmax.f32 %v316, 0.0
    %v348 = vmax.f32 %v321, 0.0
    %v349 = vld [vmem:[%s3] sm:$0x1]
    %s350 = sld [smem:[#allocation2]]
    %v351 = vstv %s350
    %vm352 = vcmask 523264
    %v354 = vsel %vm352, %v349, 0
    %v357 = vsel %vm352, %v324, 0
    %v360 = vsel %vm352, %v325, 0
    %v363 = vsel %vm352, %v326, 0
    %v366 = vsel %vm352, %v327, 0
    %v369 = vsel %vm352, %v328, 0
    %v372 = vsel %vm352, %v329, 0
    %v375 = vsel %vm352, %v330, 0
    %v378 = vsel %vm352, %v331, 0
    %v381 = vsel %vm352, %v332, 0
    %v384 = vsel %vm352, %v333, 0
    %v387 = vsel %vm352, %v334, 0
    %v390 = vsel %vm352, %v335, 0
    %v393 = vsel %vm352, %v336, 0
    %v396 = vsel %vm352, %v337, 0
    %v399 = vsel %vm352, %v338, 0
    %v402 = vsel %vm352, %v339, 0
    %v405 = vsel %vm352, %v340, 0
    %v408 = vsel %vm352, %v341, 0
    %v411 = vsel %vm352, %v342, 0
    %v414 = vsel %vm352, %v343, 0
    %v417 = vsel %vm352, %v344, 0
    %v420 = vsel %vm352, %v345, 0
    %v423 = vsel %vm352, %v346, 0
    %v426 = vsel %vm352, %v347, 0
    %v429 = vsel %vm352, %v348, 0
    %431 = vmatprep.subr.mxu0 0.0
    %432 = vmatpush1.xpose.msra.mxu0 %v357
    %433 = vmatprep.subr.mxu0 0.0
    %434 = vmatpush1.xpose.msra.mxu0 %v360
    %435 = vmatprep.subr.mxu0 0.0
    %436 = vmatpush1.xpose.msra.mxu0 %v363
    %437 = vmatprep.subr.mxu0 0.0
    %438 = vmatpush1.xpose.msra.mxu0 %v366
    %439 = vmatprep.subr.mxu0 0.0
    %440 = vmatpush1.xpose.msra.mxu0 %v369
    %441 = vmatprep.subr.mxu0 0.0
    %442 = vmatpush1.xpose.msra.mxu0 %v372
    %443 = vmatprep.subr.mxu0 0.0
    %444 = vmatpush1.xpose.msra.mxu0 %v375
    %445 = vmatprep.subr.mxu0 0.0
    %446 = vmatpush1.xpose.msra.mxu0 %v378
    %447 = vmatprep.subr.mxu0 0.0
    %448 = vmatpush1.xpose.msra.mxu0 %v381
    %449 = vmatprep.subr.mxu0 0.0
    %450 = vmatpush1.xpose.msra.mxu0 %v384
    %451 = vmatprep.subr.mxu0 0.0
    %452 = vmatpush1.xpose.msra.mxu0 %v387
    %453 = vmatprep.subr.mxu0 0.0
    %454 = vmatpush1.xpose.msra.mxu0 %v390
    %455 = vmatprep.subr.mxu0 0.0
    %456 = vmatpush1.xpose.msra.mxu0 %v393
    %457 = vmatprep.subr.mxu0 0.0
    %458 = vmatpush1.xpose.msra.mxu0 %v396
    %459 = vmatprep.subr.mxu0 0.0
    %460 = vmatpush1.xpose.msra.mxu0 %v399
    %461 = vmatprep.subr.mxu0 0.0
    %462 = vmatpush1.xpose.msra.mxu0 %v402
    %463 = vmatprep.subr.mxu0 0.0
    %464 = vmatpush1.xpose.msra.mxu0 %v405
    %465 = vmatprep.subr.mxu0 0.0
    %466 = vmatpush1.xpose.msra.mxu0 %v408
    %467 = vmatprep.subr.mxu0 0.0
    %468 = vmatpush1.xpose.msra.mxu0 %v411
    %469 = vmatprep.subr.mxu0 0.0
    %470 = vmatpush1.xpose.msra.mxu0 %v414
    %471 = vmatprep.subr.mxu0 0.0
    %472 = vmatpush1.xpose.msra.mxu0 %v417
    %473 = vmatprep.subr.mxu0 0.0
    %474 = vmatpush1.xpose.msra.mxu0 %v420
    %475 = vmatprep.subr.mxu0 0.0
    %476 = vmatpush1.xpose.msra.mxu0 %v423
    %477 = vmatprep.subr.mxu0 0.0
    %478 = vmatpush1.xpose.msra.mxu0 %v426
    %479 = vmatprep.subr.mxu0 0.0
    %480 = vmatpush1.xpose.msra.mxu0 %v429
    %481 = vmatprep.subr.mxu0 0.0
    %482 = vmatpush1.xpose.msra.mxu0 0.0
    %483 = vmatprep.subr.mxu0 0.0
    %484 = vmatpush1.xpose.msra.mxu0 0.0
    %485 = vmatprep.subr.mxu0 0.0
    %486 = vmatpush1.xpose.msra.mxu0 0.0
    %487 = vmatprep.subr.mxu0 0.0
    %488 = vmatpush1.xpose.msra.mxu0 0.0
    %489 = vmatprep.subr.mxu0 0.0
    %490 = vmatpush1.xpose.msra.mxu0 0.0
    %491 = vmatprep.subr.mxu0 0.0
    %492 = vmatpush1.xpose.msra.mxu0 0.0
    %493 = vmatprep.subr.mxu0 0.0
    %494 = vmatpush1.xpose.msra.mxu0 0.0
    %495 = vmatprep.mubr.f32.mxu0 0.0
    %496 = vmatmul.mubr.f32.gmra.mrb[0].mxu0 %v354
    %v497 = vpop.f32.mrb[0].mxu0
    %v498 = vadd.f32 %v351, %v497
    %v499 = vpop.f32.mrb[0].mxu0
    %v500 = vadd.f32 %v351, %v499
    %501 = vdwg.mxu0
    %v502 = vxor.u32 %v498, 2147483648
    %v503 = vxor.u32 %v500, 2147483648
    %v504 = vmul.f32 %v502, 1.442695
    %v505 = vpow.pop %v504
    %v506 = vmul.f32 %v503, 1.442695
    %v507 = vpow.pop %v506
    %v508 = vadd.f32 %v505, 1.0
    %v509 = vadd.f32 %v507, 1.0
    %v510 = vrcp.pop %v508
    %v511 = vmul.f32 1.0, %v510
    %v512 = vrcp.pop %v509
    %v513 = vmul.f32 1.0, %v512
    %v516 = vcombine.low %v511, %v513
    %v518 = vunpack.c.l.s4 1966171168
    %v519 = vunpack.c.0.s8 %v518
    %v520 = vlaneseq
    %v521 = vshrl.u32 %v520, 7
    %v522 = vsub.s32 %v519, %v521
    %v523 = vrot.slane %v516, %v522
    %v525 = vunpack.c.l.s4 1966171168
    %v526 = vunpack.c.0.s8 %v525
    %v527 = vlaneseq
    %v528 = vshrl.u32 %v527, 7
    %v529 = vsub.s32 %v526, %v528
    %v530 = vrot.slane %v523, %v529
    %v532 = vlaneseq
    %vm533 = vcmp.ge.s32.totalorder %v532, 0
    %vm534 = vcmp.lt.s32.totalorder %v532, 200
    %vm535 = vmand %vm533, %vm534
    %536 = vst.msk [vmem:[#allocation3] sm:$0x3] %vm535, %v530
    // Predicated region
    $region22: #{tpu_custom_call.1} parent=1 // pred_check
      _
    $region23: #{tpu_custom_call.1} parent=1 // pred_check_branch
      %538 = sbr.rel (0) target = $region25
    $region24: #{tpu_custom_call.1} parent=1 // pred_region
      %s540 = ssub.s32 32, 32
      %541 = vsyncadd [#allocation4], %s540
      %s543 = sshll.u32 [#allocation3], 4
      %s544 = int_to_ptr.vmem [resolvable:$true] %s543
      %546 = dma.vmem_to_hbm [thread:$0]  %s544, 32, %s5, [#allocation4]
    $region25: #{tpu_custom_call.1} parent=1 // pred_fallthru
      _
    // Predicated region
    $region26: #{tpu_custom_call.1} parent=1 // pred_check
      _
    $region27: #{tpu_custom_call.1} parent=1 // pred_check_branch
      %548 = sbr.rel (0) target = $region29
    $region28: #{tpu_custom_call.1} parent=1 // pred_region
      %549 = dma.done [#allocation4], 32
    $region29: #{tpu_custom_call.1} parent=1 // pred_fallthru
      _
    %550 = vsyncpa [#allocation4], 1

</llo_original>
